<compile_context>
chip_gen: v5e
topology: v5e:2x2
jax: 0.10.0
libtpu: 0.0.40
codegen_flags: <defaults>
</compile_context>

<pallas_src>
import jax
import jax.numpy as jnp
from jax.experimental import pallas as pl
from jax.experimental.pallas import tpu as pltpu

_LANES = 128


def _mish_kernel(x_ref, o_ref):
    x = x_ref[...].astype(jnp.float32)
    # tanh(softplus(x)) = (e^{2x} + 2 e^x) / (e^{2x} + 2 e^x + 2)
    # stabilized with e = exp(-|x|)  (e in (0, 1], never overflows):
    #   x >= 0: (1 + 2e) / (1 + 2e + 2e^2)
    #   x <  0: (e^2 + 2e) / (e^2 + 2e + 2)
    e = jnp.exp(-jnp.abs(x))
    e2 = e * e
    pos = x >= 0.0
    num = jnp.where(pos, 1.0 + 2.0 * e, e2 + 2.0 * e)
    den = jnp.where(pos, 1.0 + 2.0 * e + 2.0 * e2, e2 + 2.0 * e + 2.0)
    o_ref[...] = (x * (num / den)).astype(o_ref.dtype)


def _round_up(a, b):
    return (a + b - 1) // b * b


def mish(x, *, target_block_bytes=2 * 1024 * 1024):
    """Applies Mish elementwise. Accepts any (float) shape/dtype."""
    orig_shape = x.shape
    dtype = x.dtype
    n = x.size
    if n == 0:
        return x

    itemsize = jnp.dtype(dtype).itemsize
    # Native sublane tile height per dtype (sub-32-bit dtypes pack sublanes).
    sub = {4: 8, 2: 16, 1: 32}.get(itemsize, 8)

    # Rows of a lane-dense (rows, 128) slab needed to hold all elements,
    # rounded up to the native sublane tile.
    rows_min = _round_up(pl.cdiv(n, _LANES), sub)

    # Target rows per block (~target_block_bytes per block).
    tr_target = max(sub, (target_block_bytes // (_LANES * itemsize)) // sub * sub)

    # Keep the grid >= 2 whenever possible so v7x megacore uses both TCs.
    if rows_min >= 2 * sub:
        tr_cap = max(sub, (rows_min // 2) // sub * sub)
    else:
        tr_cap = rows_min
    tr = min(tr_target, tr_cap)

    # Prefer a tile height that divides rows_min exactly (no padding),
    # accepting a modest shrink (>= tr // 2, i.e. still >= ~1 MiB blocks
    # for large inputs) before falling back to padding.
    if rows_min % tr != 0:
        t = tr
        lo = max(sub, tr // 2)
        while t >= lo:
            if rows_min % t == 0:
                tr = t
                break
            t -= sub

    rows = _round_up(rows_min, tr)
    grid = rows // tr
    n_padded = rows * _LANES

    x_flat = x.reshape(-1)
    if n_padded != n:
        # Ragged size: pad the tail (only path that costs an extra copy).
        x_flat = jnp.pad(x_flat, (0, n_padded - n))
    x2d = x_flat.reshape(rows, _LANES)

    out2d = pl.pallas_call(
        _mish_kernel,
        out_shape=jax.ShapeDtypeStruct((rows, _LANES), dtype),
        grid_spec=pltpu.PrefetchScalarGridSpec(
            num_scalar_prefetch=0,
            grid=(grid,),
            in_specs=[pl.BlockSpec((tr, _LANES), lambda i: (i, 0))],
            out_specs=pl.BlockSpec((tr, _LANES), lambda i: (i, 0)),
        ),
        compiler_params=pltpu.CompilerParams(
            dimension_semantics=("parallel",),
        ),
        cost_estimate=pl.CostEstimate(
            flops=12 * n_padded,
            transcendentals=n_padded,
            bytes_accessed=2 * n_padded * itemsize,
        ),
    )(x2d)

    out_flat = out2d.reshape(-1)
    if n_padded != n:
        out_flat = out_flat[:n]
    return out_flat.reshape(orig_shape)


def _mish_ref(x):
    xf = x.astype(jnp.float32)
    sp = jnp.logaddexp(xf, 0.0)  # softplus
    return (xf * jnp.tanh(sp)).astype(x.dtype)


if __name__ == "__main__":
    key = jax.random.PRNGKey(0)

    # NCHW, consistent with PyTorch conv-style inputs in yolov4.
    x = jax.random.normal(key, (2, 4, 16, 16), dtype=jnp.float32) * 3.0
    y = mish(x)
    jax.block_until_ready(y)
    y_ref = _mish_ref(x)
    assert y.shape == x.shape and y.dtype == x.dtype
    assert jnp.allclose(y, y_ref, atol=1e-5, rtol=1e-5)

    # Ragged size (exercises the padding fallback path).
    x2 = jax.random.normal(jax.random.PRNGKey(1), (3, 5, 7, 11), jnp.float32) * 4.0
    y2 = mish(x2)
    jax.block_until_ready(y2)
    assert jnp.allclose(y2, _mish_ref(x2), atol=1e-5, rtol=1e-5)

    # bf16 path (16-row sublane tiles, compute in f32, store bf16).
    x3 = jax.random.normal(jax.random.PRNGKey(2), (2, 4, 16, 16), jnp.bfloat16)
    y3 = mish(x3)
    jax.block_until_ready(y3)
    assert y3.dtype == jnp.bfloat16
    assert jnp.allclose(y3.astype(jnp.float32),
                        _mish_ref(x3).astype(jnp.float32),
                        atol=2e-2, rtol=2e-2)

    print("KERNEL_OK")
</pallas_src>

<mosaic_0001>
module attributes {stable_mosaic.version = 11 : i64} {
  func.func @_mish_kernel(%arg0: i32, %arg1: memref<8x128xf32, #tpu.memory_space<vmem>>, %arg2: memref<8x128xf32, #tpu.memory_space<vmem>>) attributes {dimension_semantics = [#tpu.dimension_semantics<parallel>], iteration_bounds = array<i64: 2>, scalar_prefetch = 0 : i64, scratch_operands = 0 : i64, tpu.core_type = #tpu.core_type<tc>, window_params = [{transform_indices = @transform_0, window_bounds = array<i64: 8, 128>}, {transform_indices = @transform_1, window_bounds = array<i64: 8, 128>}]} {
    %c0 = arith.constant 0 : index
    %c0_0 = arith.constant 0 : index
    %0 = vector.load %arg1[%c0, %c0_0] : memref<8x128xf32, #tpu.memory_space<vmem>>, vector<8x128xf32>
    %1 = math.absf %0 : vector<8x128xf32>
    %cst = arith.constant 0.000000e+00 : f32
    %2 = vector.broadcast %cst : f32 to vector<8x128xf32>
    %3 = arith.subf %2, %1 : vector<8x128xf32>
    %4 = math.exp %3 : vector<8x128xf32>
    %5 = arith.mulf %4, %4 : vector<8x128xf32>
    %cst_1 = arith.constant 0.000000e+00 : f32
    %6 = vector.broadcast %cst_1 : f32 to vector<8x128xf32>
    %7 = arith.cmpf oge, %0, %6 : vector<8x128xf32>
    %cst_2 = arith.constant 2.000000e+00 : f32
    %8 = vector.broadcast %cst_2 : f32 to vector<8x128xf32>
    %9 = arith.mulf %8, %4 : vector<8x128xf32>
    %cst_3 = arith.constant 1.000000e+00 : f32
    %10 = vector.broadcast %cst_3 : f32 to vector<8x128xf32>
    %11 = arith.addf %10, %9 : vector<8x128xf32>
    %cst_4 = arith.constant 2.000000e+00 : f32
    %12 = vector.broadcast %cst_4 : f32 to vector<8x128xf32>
    %13 = arith.mulf %12, %4 : vector<8x128xf32>
    %14 = arith.addf %5, %13 : vector<8x128xf32>
    %15 = arith.select %7, %11, %14 : vector<8x128xi1>, vector<8x128xf32>
    %cst_5 = arith.constant 2.000000e+00 : f32
    %16 = vector.broadcast %cst_5 : f32 to vector<8x128xf32>
    %17 = arith.mulf %16, %4 : vector<8x128xf32>
    %cst_6 = arith.constant 1.000000e+00 : f32
    %18 = vector.broadcast %cst_6 : f32 to vector<8x128xf32>
    %19 = arith.addf %18, %17 : vector<8x128xf32>
    %cst_7 = arith.constant 2.000000e+00 : f32
    %20 = vector.broadcast %cst_7 : f32 to vector<8x128xf32>
    %21 = arith.mulf %20, %5 : vector<8x128xf32>
    %22 = arith.addf %19, %21 : vector<8x128xf32>
    %cst_8 = arith.constant 2.000000e+00 : f32
    %23 = vector.broadcast %cst_8 : f32 to vector<8x128xf32>
    %24 = arith.mulf %23, %4 : vector<8x128xf32>
    %25 = arith.addf %5, %24 : vector<8x128xf32>
    %cst_9 = arith.constant 2.000000e+00 : f32
    %26 = vector.broadcast %cst_9 : f32 to vector<8x128xf32>
    %27 = arith.addf %25, %26 : vector<8x128xf32>
    %28 = arith.select %7, %22, %27 : vector<8x128xi1>, vector<8x128xf32>
    %29 = arith.divf %15, %28 : vector<8x128xf32>
    %30 = arith.mulf %0, %29 : vector<8x128xf32>
    %c0_10 = arith.constant 0 : index
    %c0_11 = arith.constant 0 : index
    %31 = vector.load %arg2[%c0_10, %c0_11] : memref<8x128xf32, #tpu.memory_space<vmem>>, vector<8x128xf32>
    tpu.vector_store %arg2[%c0_10, %c0_11], %30 {strides = array<i32>} : memref<8x128xf32, #tpu.memory_space<vmem>>, vector<8x128xf32>,
    return
  }
  func.func @transform_0(%arg0: i32) -> (i32, i32) {
    %c0_i32 = arith.constant 0 : i32
    %c0_i32_0 = arith.constant 0 : i32
    return %arg0, %c0_i32 : i32, i32
  }
  func.func @transform_1(%arg0: i32) -> (i32, i32) {
    %c0_i32 = arith.constant 0 : i32
    %c0_i32_0 = arith.constant 0 : i32
    return %arg0, %c0_i32 : i32, i32
  }
}

</mosaic_0001>

<llo_original>
// kernel: tpu_custom_call.1
$region0: #{tpu_custom_call.1}
  #allocation0 [shape = 'u32[]', space=smem, size = 0x4, offset = 0x4, fixed_abs, tag = 'smem constant byte address 0x4 - core index']
  #allocation1 [shape = 'u32[72,128]{1,0:T(1,128)}', space=vmem, size = 0x9000, scoped, tag = 'internal scratch']
  %s0 = inlined_call_operand.hbm [shape: f32[16,128], index: 0, kind: input, shape index: {}]
  %s1 = inlined_call_operand.hbm [shape: f32[16,128], index: 1, kind: output, shape index: {}]
  %s2 = sld [smem:[#allocation0]]
  $region41: #{tpu_custom_call.1} parent=0
    _
  %s4 = ssub.s32 1, %s2
  %s5 = scalar_select 0, %s4, %s2
  $region1: #{tpu_custom_call.1} parent=0
    #allocation2 [shape = 'u8[8192]{0}', space=vmem, size = 0x2000, scoped, tag = 'input window, operand 0']
    #allocation3 [shape = 's32[2]{0}', space=sflag, size = 0x8, scoped, tag = 'scoped memory for tpu_custom_call.1']
    #allocation4 [shape = 's32[2]{0}', space=sflag, size = 0x8, scoped, tag = 'scoped memory for tpu_custom_call.1']
    #allocation5 [shape = 'u8[8192]{0}', space=vmem, size = 0x2000, scoped, tag = 'output window, operand 0']
    %6 = vsyncpa [#allocation3], 0
    %s7 = scalar_lea.sflag [#allocation3], 1
    %8 = vsyncpa %s7, 0
    %9 = vsyncpa [#allocation4], 0
    %s10 = scalar_lea.sflag [#allocation4], 1
    %11 = vsyncpa %s10, 0
    loop: start=0, step=1, limit=4
    $region2: #{tpu_custom_call.1} parent=1 // loop_pre_header
      _
    $region3: #{tpu_custom_call.1} parent=1 // loop_header
      %s13 = sphi 0, %s17
      %p14 = scmp.ge.s32.totalorder %s13, 4
      %s23 = sphi 0, %s25
      %s26 = sphi 0, %s23
      %s27 = sphi 0, %s26
      %s43 = sphi 0, %s27
      %s49 = sphi 0, %s51
      %s52 = sphi 0, %s49
      %s53 = sphi 0, %s52
      %s69 = sphi 0, %s53
    $region4: #{tpu_custom_call.1} parent=1 // loop_header_branch
      %16 = sbr.rel (%p14) target = $region8
    $region5: #{tpu_custom_call.1} parent=1 // loop_body
      %s18 = ssub.s32 %s13, 1
      %s19 = ssub.s32 %s13, 2
      %s20 = sadd.s32 %s13, 1
      %s21 = ssub.s32 %s13, %s20
      %p22 = scmp.eq.s32.totalorder %s21, 0
      %s24 = sadd.s32 %s23, 1
      %s25 = scalar_select %p22, %s23, %s24
      %p28 = pneg %p22
      %p29 = scmp.eq.s32.totalorder %s13, 1
      %p30 = por %p28, %p29
      %p31 = scmp.ne.s32.totalorder %s23, %s26
      %p32 = scmp.eq.s32.totalorder %s13, 0
      %p33 = por %p31, %p32
      %p34 = scmp.ne.s32.totalorder %s23, %s26
      %p35 = scmp.eq.s32.totalorder %s18, 1
      %p36 = por %p34, %p35
      %p37 = scmp.ne.s32.totalorder %s26, %s27
      %p38 = scmp.eq.s32.totalorder %s18, 0
      %p39 = por %p37, %p38
      %p40 = scmp.ne.s32.totalorder %s26, %s27
      %p41 = scmp.eq.s32.totalorder %s19, 1
      %p42 = por %p40, %p41
      %p44 = scmp.ne.s32.totalorder %s27, %s43
      %p45 = scmp.eq.s32.totalorder %s19, 0
      %p46 = por %p44, %p45
      %s47 = ssub.s32 %s13, %s20
      %p48 = scmp.eq.s32.totalorder %s47, 0
      %s50 = sadd.s32 %s49, 1
      %s51 = scalar_select %p48, %s49, %s50
      %p54 = pneg %p48
      %p55 = scmp.eq.s32.totalorder %s13, 1
      %p56 = por %p54, %p55
      %p57 = scmp.ne.s32.totalorder %s49, %s52
      %p58 = scmp.eq.s32.totalorder %s13, 0
      %p59 = por %p57, %p58
      %p60 = scmp.ne.s32.totalorder %s49, %s52
      %p61 = scmp.eq.s32.totalorder %s18, 1
      %p62 = por %p60, %p61
      %p63 = scmp.ne.s32.totalorder %s52, %s53
      %p64 = scmp.eq.s32.totalorder %s18, 0
      %p65 = por %p63, %p64
      %p66 = scmp.ne.s32.totalorder %s52, %s53
      %p67 = scmp.eq.s32.totalorder %s19, 1
      %p68 = por %p66, %p67
      %p70 = scmp.ne.s32.totalorder %s53, %s69
      %p71 = scmp.eq.s32.totalorder %s19, 0
      %p72 = por %p70, %p71
      %p73 = scmp.le.s32.totalorder 1, %s13
      %p74 = scmp.lt.s32.totalorder %s13, 3
      %p75 = pnand %p73, %p74
      %p76 = pneg %p75
      // Predicated region
      $region9: #{tpu_custom_call.1} parent=5 // pred_check
        _
      $region10: #{tpu_custom_call.1} parent=5 // pred_check_branch
        %78 = sbr.rel (%p75) target = $region12
      $region11: #{tpu_custom_call.1} parent=5 // pred_region
        %s79 = ssub.s32 %s13, 1
      $region12: #{tpu_custom_call.1} parent=5 // pred_fallthru
        _
      %p80 = scmp.lt.s32.totalorder %s13, 2
      // Predicated region
      $region13: #{tpu_custom_call.1} parent=5 // pred_check
        %p81 = pneg %p80
      $region14: #{tpu_custom_call.1} parent=5 // pred_check_branch
        %83 = sbr.rel (%p81) target = $region16
      $region15: #{tpu_custom_call.1} parent=5 // pred_region
        // Predicated region
        $region17: #{tpu_custom_call.1} parent=15 // pred_check
          %p84 = pneg %p33
        $region18: #{tpu_custom_call.1} parent=15 // pred_check_branch
          %86 = sbr.rel (%p84) target = $region20
        $region19: #{tpu_custom_call.1} parent=15 // pred_region
          %s87 = sand.u32 %s23, 1
          %s88 = scalar_lea.sflag [#allocation3], %s87
          %s89 = sand.u32 %s23, 1
          %s90 = smul.addr %s89, 8
          %s91 = scalar_lea.vmem [#allocation2], %s90
          %93 = vsyncadd %s88, 0
          %s94 = smul.addr %s13, 8
          %s95 = scalar_lea.hbm %s0, %s94
          %s97 = sshll.u32 %s95, 4
          %s98 = int_to_ptr.hbm [resolvable:$true] %s97
          %s99 = sshll.u32 %s91, 4
          %s100 = int_to_ptr.vmem [resolvable:$true] %s99
          %102 = dma.hbm_to_vmem [thread:$0]  %s98, 128, %s100, %s88
        $region20: #{tpu_custom_call.1} parent=15 // pred_fallthru
          _
      $region16: #{tpu_custom_call.1} parent=5 // pred_fallthru
        _
      %p103 = scmp.le.s32.totalorder 1, %s13
      %p104 = scmp.lt.s32.totalorder %s13, 3
      %p105 = pnand %p103, %p104
      %p106 = pneg %p105
      // Predicated region
      $region21: #{tpu_custom_call.1} parent=5 // pred_check
        _
      $region22: #{tpu_custom_call.1} parent=5 // pred_check_branch
        %108 = sbr.rel (%p105) target = $region24
      $region23: #{tpu_custom_call.1} parent=5 // pred_region
        %s109 = ssub.s32 %s13, 1
        %s110 = sand.u32 %s26, 1
        %s111 = scalar_lea.sflag [#allocation3], %s110
        %s112 = sand.u32 %s26, 1
        %s113 = smul.addr %s112, 8
        %s114 = scalar_lea.vmem [#allocation2], %s113
        // Predicated region
        $region25: #{tpu_custom_call.1} parent=23 // pred_check
          %p115 = pneg %p39
        $region26: #{tpu_custom_call.1} parent=23 // pred_check_branch
          %117 = sbr.rel (%p115) target = $region28
        $region27: #{tpu_custom_call.1} parent=23 // pred_region
          %119 = dma.done %s111, 128
        $region28: #{tpu_custom_call.1} parent=23 // pred_fallthru
          _
        %s120 = sand.u32 %s26, 1
        %s121 = scalar_lea.sflag [#allocation3], %s120
        %s122 = sand.u32 %s26, 1
        %s123 = smul.addr %s122, 8
        %s124 = scalar_lea.vmem [#allocation2], %s123
        %p125 = pneg %p39
        %p126 = pneg %p36
        %p127 = pneg %p65
        %p128 = pneg %p62
        %s129 = sand.u32 %s52, 1
        %s130 = scalar_lea.sflag [#allocation4], %s129
        %s131 = sand.u32 %s52, 1
        %s132 = smul.addr %s131, 8
        %s133 = scalar_lea.vmem [#allocation5], %s132
        %v134 = vld [vmem:[%s114] sm:$0xff]
        %v135 = vand.u32 2147483647, %v134
        %v136 = vsub.f32 0.0, %v135
        %v137 = vmul.f32 %v136, 1.442695
        %v138 = vpow.pop %v137
        %v139 = vmul.f32 %v138, %v138
        %vm140 = vcmp.ge.f32.partialorder %v134, 0.0
        %v141 = vmul.f32 %v138, 2.0
        %v142 = vadd.f32 %v141, 1.0
        %v143 = vadd.f32 %v139, %v141
        %v144 = vsel %vm140, %v142, %v143
        %v145 = vmul.f32 %v139, 2.0
        %v146 = vadd.f32 %v142, %v145
        %v147 = vadd.f32 %v143, 2.0
        %v148 = vsel %vm140, %v146, %v147
        %v149 = vrcp.pop %v148
        %v150 = vmul.f32 %v148, %v149
        %v151 = vsub.f32 1.0, %v150
        %v152 = vmul.f32 %v149, %v151
        %v153 = vadd.f32 %v149, %v152
        %vm154 = vweird.f32 %v148
        %vm155 = vweird.f32 %v149
        %vm156 = vmor %vm154, %vm155
        %v157 = vsel %vm156, %v149, %v153
        %v158 = vand.u32 2147483647, %v148
        %vm159 = vcmp.eq.f32.partialorder %v158, 8.507059e+37
        %v160 = vand.u32 %v148, 2147483648
        %v161 = vor.u32 1.1754944e-38, %v160
        %v162 = vsel %vm159, %v161, %v157
        %v163 = vmul.f32 %v144, %v162
        %v164 = vmul.f32 %v134, %v163
        %165 = vst [vmem:[%s133] sm:$0xff] %v164
        %s166 = sand.u32 %s52, 1
        %s167 = scalar_lea.sflag [#allocation4], %s166
        %s168 = sand.u32 %s52, 1
        %s169 = smul.addr %s168, 8
        %s170 = scalar_lea.vmem [#allocation5], %s169
        // Predicated region
        $region29: #{tpu_custom_call.1} parent=23 // pred_check
          %p171 = pneg %p62
        $region30: #{tpu_custom_call.1} parent=23 // pred_check_branch
          %173 = sbr.rel (%p171) target = $region32
        $region31: #{tpu_custom_call.1} parent=23 // pred_region
          %175 = vsyncadd %s167, 0
          %s176 = smul.addr %s18, 8
          %s177 = scalar_lea.hbm %s1, %s176
          %s179 = sshll.u32 %s170, 4
          %s180 = int_to_ptr.vmem [resolvable:$true] %s179
          %s181 = sshll.u32 %s177, 4
          %s182 = int_to_ptr.hbm [resolvable:$true] %s181
          %184 = dma.vmem_to_hbm [thread:$0]  %s180, 128, %s182, %s167
        $region32: #{tpu_custom_call.1} parent=23 // pred_fallthru
          _
      $region24: #{tpu_custom_call.1} parent=5 // pred_fallthru
        _
      %p185 = scmp.le.s32.totalorder 2, %s13
      // Predicated region
      $region33: #{tpu_custom_call.1} parent=5 // pred_check
        %p186 = pneg %p185
      $region34: #{tpu_custom_call.1} parent=5 // pred_check_branch
        %188 = sbr.rel (%p186) target = $region36
      $region35: #{tpu_custom_call.1} parent=5 // pred_region
        %s189 = ssub.s32 %s13, 2
        // Predicated region
        $region37: #{tpu_custom_call.1} parent=35 // pred_check
          %p190 = pneg %p68
        $region38: #{tpu_custom_call.1} parent=35 // pred_check_branch
          %192 = sbr.rel (%p190) target = $region40
        $region39: #{tpu_custom_call.1} parent=35 // pred_region
          %s193 = sand.u32 %s53, 1
          %s194 = scalar_lea.sflag [#allocation4], %s193
          %s195 = sand.u32 %s53, 1
          %s196 = smul.addr %s195, 8
          %s197 = scalar_lea.vmem [#allocation5], %s196
          %199 = dma.done %s194, 128
        $region40: #{tpu_custom_call.1} parent=35 // pred_fallthru
          _
      $region36: #{tpu_custom_call.1} parent=5 // pred_fallthru
        _
    $region6: #{tpu_custom_call.1} parent=1 // loop_footer
      %s17 = sadd.s32 1, %s13
    $region7: #{tpu_custom_call.1} parent=1 // loop_footer_branch
      %12 = sbr.rel target = $region3
    $region8: #{tpu_custom_call.1} parent=1 // loop_exit
      _
    %200 = vsyncpa [#allocation3], 1
    %s201 = scalar_lea.sflag [#allocation3], 1
    %202 = vsyncpa %s201, 1
    %203 = vsyncpa [#allocation4], 1
    %s204 = scalar_lea.sflag [#allocation4], 1
    %205 = vsyncpa %s204, 1

</llo_original>
